<compile_context>
chip_gen: v7x
topology: tpu7x:2x2x1
jax: 0.10.0
libtpu: 0.0.40
codegen_flags: <defaults>
</compile_context>

<pallas_src>
import jax
import jax.numpy as jnp
from jax import lax
from jax.experimental import pallas as pl
from jax.experimental.pallas import tpu as pltpu

LANE = 128                              # vreg lane width  -> hidden padding
SUBLANE = 8                             # f32 sublanes     -> batch padding
_VMEM_LIMIT_BYTES = 32 * 1024 * 1024    # explicit, safe on v5e/v6e/v7x
_CHUNK_BYTE_BUDGET = 8 * 1024 * 1024    # streamed (double-buffered) block budget


def _round_up(x, m):
    return ((x + m - 1) // m) * m


def _largest_divisor_at_most(n, cap):
    cap = max(1, min(n, cap))
    for d in range(cap, 0, -1):
        if n % d == 0:
            return d
    return 1


# ---------------------------------------------------------------------------
# Kernel 1: big input-to-hidden GEMM (all gates, both directions, whole seq)
#   x2d (M, In) @ W (In, G) + b (1, G)  with M = T * Bp, G = D * 3 * Hp
# ---------------------------------------------------------------------------
def _gi_kernel(x_ref, w_ref, b_ref, out_ref):
    out_ref[...] = (jnp.dot(x_ref[...], w_ref[...],
                            preferred_element_type=jnp.float32)
                    + b_ref[...]).astype(out_ref.dtype)


def _input_gates_matmul(x2d, w, b, row_chunk):
    M, In = x2d.shape
    G = w.shape[1]
    return pl.pallas_call(
        _gi_kernel,
        out_shape=jax.ShapeDtypeStruct((M, G), jnp.float32),
        grid=(M // row_chunk,),
        in_specs=[
            pl.BlockSpec((row_chunk, In), lambda r: (r, 0)),
            pl.BlockSpec((In, G), lambda r: (0, 0)),   # constant block -> single DMA
            pl.BlockSpec((1, G), lambda r: (0, 0)),
        ],
        out_specs=pl.BlockSpec((row_chunk, G), lambda r: (r, 0)),
        compiler_params=pltpu.CompilerParams(
            dimension_semantics=("parallel",),
            vmem_limit_bytes=_VMEM_LIMIT_BYTES),
    )(x2d, w, b)


# ---------------------------------------------------------------------------
# Kernel 2: recurrent GRU pass (one layer, one direction).
# Gate order (PyTorch): r, z, n   laid out as [0:Hp | Hp:2Hp | 2Hp:3Hp].
#   r = sigmoid(gi_r + gh_r);  z = sigmoid(gi_z + gh_z)
#   n = tanh(gi_n + r * gh_n); h' = (1 - z) * n + z * h
# gi (input-to-hidden part, incl. b_ih) is precomputed by kernel 1.
# ---------------------------------------------------------------------------
def _make_gru_recurrent_kernel(reverse: bool):
    def kernel(gi_ref, len_ref, whh_ref, bhh_ref, h0_ref,
               out_ref, hn_ref, h_scr):
        c = pl.program_id(0)
        n_chunks = pl.num_programs(0)
        Tc = gi_ref.shape[0]
        Hp = h_scr.shape[-1]

        @pl.when(c == 0)
        def _():
            h_scr[...] = h0_ref[...]

        lengths = len_ref[...]                       # (Bp, 1) int32
        chunk_idx = (n_chunks - 1 - c) if reverse else c
        base = chunk_idx * Tc

        def step(s, h):
            local = (Tc - 1 - s) if reverse else s
            t_actual = base + local
            gi = gi_ref[local]                       # (Bp, 3Hp)
            # single fused recurrent matmul: one MXU push per step
            gh = jnp.dot(h, whh_ref[...],
                         preferred_element_type=jnp.float32) + bhh_ref[...]
            r = jax.nn.sigmoid(gi[:, 0:Hp] + gh[:, 0:Hp])
            z = jax.nn.sigmoid(gi[:, Hp:2 * Hp] + gh[:, Hp:2 * Hp])
            n = jnp.tanh(gi[:, 2 * Hp:3 * Hp] + r * gh[:, 2 * Hp:3 * Hp])
            h_new = (1.0 - z) * n + z * h
            valid = t_actual < lengths               # (Bp, 1) -> broadcasts over Hp
            out_ref[local] = jnp.where(valid, h_new, 0.0).astype(out_ref.dtype)
            return jnp.where(valid, h_new, h)

        unroll = bool(Tc <= 16)
        h_final = lax.fori_loop(0, Tc, step, h_scr[...], unroll=unroll)
        h_scr[...] = h_final

        @pl.when(c == n_chunks - 1)                  # write hn exactly once
        def _():
            hn_ref[...] = h_final.astype(hn_ref.dtype)

    return kernel


def gru_layer_direction(gi_all, lengths, whh, bhh, h0, *, direction, reverse,
                        time_chunk):
    """One GRU layer, one direction, full (padded) sequence.

    gi_all  : (T, Bp, D*3*Hp)  precomputed input gates (both directions)
    lengths : (Bp, 1) int32
    whh     : (Hp, 3*Hp)   fused recurrent gate weights
    bhh     : (1, 3*Hp)
    h0      : (Bp, Hp)
    returns : output (T, Bp, Hp), hn (Bp, Hp)
    """
    T, Bp, _ = gi_all.shape
    Hp = h0.shape[-1]
    G3 = 3 * Hp
    n_chunks = T // time_chunk

    if reverse:
        gi_map = lambda c: (n_chunks - 1 - c, 0, direction)
        out_map = lambda c: (n_chunks - 1 - c, 0, 0)
    else:
        gi_map = lambda c: (c, 0, direction)
        out_map = lambda c: (c, 0, 0)

    out, hn = pl.pallas_call(
        _make_gru_recurrent_kernel(reverse),
        out_shape=(jax.ShapeDtypeStruct((T, Bp, Hp), jnp.float32),
                   jax.ShapeDtypeStruct((Bp, Hp), jnp.float32)),
        grid=(n_chunks,),
        in_specs=[
            pl.BlockSpec((time_chunk, Bp, G3), gi_map),   # gi slab (this direction)
            pl.BlockSpec((Bp, 1), lambda c: (0, 0)),      # lengths   (fetched once)
            pl.BlockSpec((Hp, G3), lambda c: (0, 0)),     # W_hh fused (fetched once)
            pl.BlockSpec((1, G3), lambda c: (0, 0)),      # b_hh       (fetched once)
            pl.BlockSpec((Bp, Hp), lambda c: (0, 0)),     # h0         (fetched once)
        ],
        out_specs=(
            pl.BlockSpec((time_chunk, Bp, Hp), out_map),  # lane-dense output slab
            pl.BlockSpec((Bp, Hp), lambda c: (0, 0)),     # hn (resident block)
        ),
        scratch_shapes=[pltpu.VMEM((Bp, Hp), jnp.float32)],
        compiler_params=pltpu.CompilerParams(
            dimension_semantics=("arbitrary",),           # sequential time scan
            vmem_limit_bytes=_VMEM_LIMIT_BYTES),
    )(gi_all, lengths, whh, bhh, h0)
    return out, hn


# ---------------------------------------------------------------------------
# Encoder: embedding lookup (JAX glue) + stacked (bi)GRU (Pallas kernels)
# ---------------------------------------------------------------------------
class PallasEncoder:
    def __init__(self, input_size, hidden_size, num_layers, dropout,
                 bidirectional, vocab_size, key):
        self.num_directions = 2 if bidirectional else 1
        assert hidden_size % self.num_directions == 0
        self.hidden_size = hidden_size // self.num_directions   # true per-dir H
        self.num_layers = num_layers
        self.input_size = input_size
        del dropout  # TODO(synk): training-only inter-layer dropout omitted

        H = self.hidden_size
        D = self.num_directions
        Hp = _round_up(H, LANE)                                  # lane-padded H
        self.hidden_pad = Hp

        scale = 1.0 / float(H) ** 0.5
        keys = jax.random.split(key, 1 + num_layers * D * 4)
        self.embedding = jax.random.normal(
            keys[0], (vocab_size, input_size), jnp.float32) * 0.1

        # padded / fused parameters
        self.w_ih_all = []   # per layer: (In_pad, D*3*Hp)   (gi GEMM weights)
        self.b_ih_all = []   # per layer: (1, D*3*Hp)
        self.w_hh = []       # per layer per dir: (Hp, 3*Hp)
        self.b_hh = []       # per layer per dir: (1, 3*Hp)

        k = 1
        for layer in range(num_layers):
            in_true = input_size if layer == 0 else H * D
            in_pad = input_size if layer == 0 else Hp * D
            wih_dirs, bih_dirs, whh_dirs, bhh_dirs = [], [], [], []
            for _ in range(D):
                w_ih = jax.random.uniform(keys[k + 0], (3, in_true, H),
                                          jnp.float32, -scale, scale)
                w_hh = jax.random.uniform(keys[k + 1], (3, H, H),
                                          jnp.float32, -scale, scale)
                b_ih = jax.random.uniform(keys[k + 2], (3, H),
                                          jnp.float32, -scale, scale)
                b_hh = jax.random.uniform(keys[k + 3], (3, H),
                                          jnp.float32, -scale, scale)
                k += 4

                # zero-pad & fuse gates [r | z | n] along the lane axis
                wih_p = jnp.zeros((in_pad, 3 * Hp), jnp.float32)
                if layer == 0:
                    row_blocks = [(0, 0, in_true)]
                else:  # inputs are the concat of D padded direction outputs
                    row_blocks = [(di * H, di * Hp, H) for di in range(D)]
                bih_p = jnp.zeros((1, 3 * Hp), jnp.float32)
                whh_p = jnp.zeros((Hp, 3 * Hp), jnp.float32)
                bhh_p = jnp.zeros((1, 3 * Hp), jnp.float32)
                for g in range(3):
                    for (src, dst, ln) in row_blocks:
                        wih_p = wih_p.at[dst:dst + ln, g * Hp:g * Hp + H].set(
                            w_ih[g, src:src + ln, :])
                    bih_p = bih_p.at[0, g * Hp:g * Hp + H].set(b_ih[g])
                    whh_p = whh_p.at[0:H, g * Hp:g * Hp + H].set(w_hh[g])
                    bhh_p = bhh_p.at[0, g * Hp:g * Hp + H].set(b_hh[g])

                wih_dirs.append(wih_p)
                bih_dirs.append(bih_p)
                whh_dirs.append(whh_p)
                bhh_dirs.append(bhh_p)

            self.w_ih_all.append(jnp.concatenate(wih_dirs, axis=1))
            self.b_ih_all.append(jnp.concatenate(bih_dirs, axis=1))
            self.w_hh.append(whh_dirs)
            self.b_hh.append(bhh_dirs)

    def __call__(self, input_ids, lengths, h0=None):
        """
        input_ids : (seq_len, batch) int32 padded token ids
        lengths   : (1, batch) int   sequence lengths (sorted descending)
        h0        : optional (num_layers*num_directions, batch, hidden)
        returns   : (hn, output)
            hn     : (num_layers*num_directions, batch, hidden)
            output : (seq_len, batch, hidden*num_directions), zero-padded
        """
        T, B = input_ids.shape
        H, Hp = self.hidden_size, self.hidden_pad
        D, L = self.num_directions, self.num_layers
        Bp = _round_up(B, SUBLANE)

        # pad batch / lengths / h0 (padded batch rows get length 0 -> inert)
        ids_p = jnp.pad(input_ids.astype(jnp.int32), ((0, 0), (0, Bp - B)))
        len_col = jnp.zeros((Bp, 1), jnp.int32).at[:B, 0].set(
            lengths.reshape(-1).astype(jnp.int32))
        h0_p = jnp.zeros((L * D, Bp, Hp), jnp.float32)
        if h0 is not None:
            h0_p = h0_p.at[:, :B, :H].set(h0.astype(jnp.float32))

        # embedding lookup (JAX glue)
        # TODO(synk): could be fused into the layer-0 gi GEMM via scalar-prefetch
        #             row gather; kept as glue here.
        x = jnp.take(self.embedding, ids_p, axis=0)          # (T, Bp, I)

        hns = []
        dir_outs = []
        for layer in range(L):
            in_pad = x.shape[-1]
            gate_w = self.w_ih_all[layer]
            # one big (T*Bp, in_pad) x (in_pad, D*3*Hp) GEMM for all gates/dirs
            per_row = 8 * (in_pad + gate_w.shape[1])          # f32, double-buffered
            t_rows = _largest_divisor_at_most(
                T, max(1, _CHUNK_BYTE_BUDGET // (per_row * Bp)))
            gi_2d = _input_gates_matmul(x.reshape(T * Bp, in_pad), gate_w,
                                        self.b_ih_all[layer],
                                        row_chunk=t_rows * Bp)
            gi_all = gi_2d.reshape(T, Bp, D * 3 * Hp)

            # recurrent scan (time chunked; budget sized for v7x's smaller VMEM)
            per_step = 8 * Bp * 4 * Hp                        # gi + out, 2 buffers
            t_chunk = _largest_divisor_at_most(
                T, min(64, max(1, _CHUNK_BYTE_BUDGET // per_step)))

            dir_outs = []
            for d in range(D):
                out, hn = gru_layer_direction(
                    gi_all, len_col, self.w_hh[layer][d], self.b_hh[layer][d],
                    h0_p[layer * D + d], direction=d, reverse=(d == 1),
                    time_chunk=t_chunk)
                dir_outs.append(out)
                hns.append(hn)
            x = (dir_outs[0] if D == 1
                 else jnp.concatenate(dir_outs, axis=-1))     # (T, Bp, D*Hp)

        out_true = (dir_outs[0][:, :B, :H] if D == 1 else
                    jnp.concatenate([o[:, :B, :H] for o in dir_outs], axis=-1))
        hn = jnp.stack(hns, axis=0)[:, :B, :H]
        return hn, out_true


# ---------------------------------------------------------------------------
# Pure-JAX reference (true, unpadded GRU math) for validation
# ---------------------------------------------------------------------------
def _reference_encoder(enc, input_ids, lengths, h0):
    T, B = input_ids.shape
    H, Hp = enc.hidden_size, enc.hidden_pad
    D, L = enc.num_directions, enc.num_layers
    lens = lengths.reshape(-1).astype(jnp.int32)
    x = jnp.take(enc.embedding, input_ids, axis=0)
    if h0 is None:
        h0 = jnp.zeros((L * D, B, H), jnp.float32)
    hi = jax.lax.Precision.HIGHEST

    def extract(layer, d):
        in_true = enc.input_size if layer == 0 else H * D
        Wp = enc.w_ih_all[layer][:, d * 3 * Hp:(d + 1) * 3 * Hp]
        bp = enc.b_ih_all[layer][:, d * 3 * Hp:(d + 1) * 3 * Hp]
        whh_p, bhh_p = enc.w_hh[layer][d], enc.b_hh[layer][d]
        row_blocks = ([(0, 0, in_true)] if layer == 0
                      else [(di * H, di * Hp, H) for di in range(D)])
        w_ih = jnp.zeros((3, in_true, H), jnp.float32)
        for g in range(3):
            for (src, dst, ln) in row_blocks:
                w_ih = w_ih.at[g, src:src + ln, :].set(
                    Wp[dst:dst + ln, g * Hp:g * Hp + H])
        b_ih = jnp.stack([bp[0, g * Hp:g * Hp + H] for g in range(3)])
        w_hh = jnp.stack([whh_p[0:H, g * Hp:g * Hp + H] for g in range(3)])
        b_hh = jnp.stack([bhh_p[0, g * Hp:g * Hp + H] for g in range(3)])
        return w_ih, b_ih, w_hh, b_hh

    def run_dir(x, layer, d, reverse):
        w_ih, b_ih, w_hh, b_hh = extract(layer, d)
        h = h0[layer * D + d]
        outs = [None] * T
        order = range(T - 1, -1, -1) if reverse else range(T)
        for t in order:
            gi = jnp.einsum('bi,gih->gbh', x[t], w_ih, precision=hi) + b_ih[:, None, :]
            gh = jnp.einsum('bh,ghk->gbk', h, w_hh, precision=hi) + b_hh[:, None, :]
            r = jax.nn.sigmoid(gi[0] + gh[0])
            z = jax.nn.sigmoid(gi[1] + gh[1])
            n = jnp.tanh(gi[2] + r * gh[2])
            h_new = (1.0 - z) * n + z * h
            valid = (t < lens)[:, None]
            h = jnp.where(valid, h_new, h)
            outs[t] = jnp.where(valid, h_new, 0.0)
        return jnp.stack(outs, axis=0), h

    hns = []
    for layer in range(L):
        douts = []
        for d in range(D):
            o, hn = run_dir(x, layer, d, reverse=(d == 1))
            douts.append(o)
            hns.append(hn)
        x = douts[0] if D == 1 else jnp.concatenate(douts, axis=-1)
    return jnp.stack(hns, axis=0), x


if __name__ == "__main__":
    key = jax.random.PRNGKey(0)
    k_enc, k_ids, k_h0 = jax.random.split(key, 3)

    vocab_size = 32
    input_size = 16
    hidden_size = 32          # total; per-direction = 16 (bidirectional)
    num_layers = 2
    bidirectional = True
    seq_len, batch = 8, 4

    enc = PallasEncoder(input_size, hidden_size, num_layers, dropout=0.0,
                        bidirectional=bidirectional, vocab_size=vocab_size,
                        key=k_enc)

    input_ids = jax.random.randint(k_ids, (seq_len, batch), 0, vocab_size,
                                   dtype=jnp.int32)
    lengths = jnp.array([[8, 6, 5, 3]], dtype=jnp.int32)   # (1, batch), sorted desc
    h0 = jax.random.normal(
        k_h0, (num_layers * enc.num_directions, batch, enc.hidden_size),
        jnp.float32) * 0.1

    hn, output = enc(input_ids, lengths, h0)
    jax.block_until_ready((hn, output))

    assert hn.shape == (num_layers * enc.num_directions, batch, enc.hidden_size)
    assert output.shape == (seq_len, batch, enc.hidden_size * enc.num_directions)

    hn_ref, out_ref = _reference_encoder(enc, input_ids, lengths, h0)
    assert bool(jnp.allclose(hn, hn_ref, rtol=3e-3, atol=3e-3))
    assert bool(jnp.allclose(output, out_ref, rtol=3e-3, atol=3e-3))

    print("KERNEL_OK")
</pallas_src>

<mosaic_0001>
module attributes {stable_mosaic.version = 11 : i64} {
  func.func @_gi_kernel(%arg0: i32, %arg1: memref<64x16xf32, #tpu.memory_space<vmem>>, %arg2: memref<16x768xf32, #tpu.memory_space<vmem>>, %arg3: memref<1x768xf32, #tpu.memory_space<vmem>>, %arg4: memref<64x768xf32, #tpu.memory_space<vmem>>) attributes {dimension_semantics = [#tpu.dimension_semantics<parallel>], iteration_bounds = array<i64: 1>, scalar_prefetch = 0 : i64, scratch_operands = 0 : i64, tpu.core_type = #tpu.core_type<tc>, window_params = [{transform_indices = @transform_0, window_bounds = array<i64: 64, 16>}, {pipeline_mode = #tpu.pipeline_mode<synchronous>, transform_indices = @transform_1, window_bounds = array<i64: 16, 768>}, {pipeline_mode = #tpu.pipeline_mode<synchronous>, transform_indices = @transform_2, window_bounds = array<i64: 1, 768>}, {transform_indices = @transform_3, window_bounds = array<i64: 64, 768>}]} {
    %c0 = arith.constant 0 : index
    %c0_0 = arith.constant 0 : index
    %0 = vector.load %arg1[%c0, %c0_0] : memref<64x16xf32, #tpu.memory_space<vmem>>, vector<64x16xf32>
    %c0_1 = arith.constant 0 : index
    %c0_2 = arith.constant 0 : index
    %1 = vector.load %arg2[%c0_1, %c0_2] : memref<16x768xf32, #tpu.memory_space<vmem>>, vector<16x768xf32>
    %cst = arith.constant dense<0.000000e+00> : vector<64x768xf32>
    %2 = tpu.matmul %0, %1, %cst {dimension_numbers = #tpu.dot_dimension_numbers<[1], [0], [0], [1], [0, 0, 1, 1], [], []>} : vector<64x16xf32>, vector<16x768xf32>, vector<64x768xf32> -> vector<64x768xf32>
    %c0_3 = arith.constant 0 : index
    %c0_4 = arith.constant 0 : index
    %3 = vector.load %arg3[%c0_3, %c0_4] : memref<1x768xf32, #tpu.memory_space<vmem>>, vector<1x768xf32>
    %4 = vector.broadcast %3 : vector<1x768xf32> to vector<64x768xf32>
    %5 = arith.addf %2, %4 : vector<64x768xf32>
    %c0_5 = arith.constant 0 : index
    %c0_6 = arith.constant 0 : index
    %6 = vector.load %arg4[%c0_5, %c0_6] : memref<64x768xf32, #tpu.memory_space<vmem>>, vector<64x768xf32>
    tpu.vector_store %arg4[%c0_5, %c0_6], %5 {strides = array<i32>} : memref<64x768xf32, #tpu.memory_space<vmem>>, vector<64x768xf32>,
    return
  }
  func.func @transform_0(%arg0: i32) -> (i32, i32) {
    %c0_i32 = arith.constant 0 : i32
    %c0_i32_0 = arith.constant 0 : i32
    return %arg0, %c0_i32 : i32, i32
  }
  func.func @transform_1(%arg0: i32) -> (i32, i32) {
    %c0_i32 = arith.constant 0 : i32
    %c0_i32_0 = arith.constant 0 : i32
    %c0_i32_1 = arith.constant 0 : i32
    return %c0_i32, %c0_i32_0 : i32, i32
  }
  func.func @transform_2(%arg0: i32) -> (i32, i32) {
    %c0_i32 = arith.constant 0 : i32
    %c0_i32_0 = arith.constant 0 : i32
    %c0_i32_1 = arith.constant 0 : i32
    return %c0_i32, %c0_i32_0 : i32, i32
  }
  func.func @transform_3(%arg0: i32) -> (i32, i32) {
    %c0_i32 = arith.constant 0 : i32
    %c0_i32_0 = arith.constant 0 : i32
    return %arg0, %c0_i32 : i32, i32
  }
}

</mosaic_0001>

<llo_original>
// kernel: tpu_custom_call.1
$region0: #{tpu_custom_call.1}
  #allocation0 [shape = 'u32[]', space=smem, size = 0x4, offset = 0x4, fixed_abs, tag = 'smem constant byte address 0x4 - core index']
  #allocation1 [shape = 'u32[144,128]{1,0:T(1,128)}', space=vmem, size = 0x12000, scoped, tag = 'internal scratch']
  %s0 = inlined_call_operand.vmem [shape: f32[64,16], index: 0, kind: input, shape index: {}]
  %s1 = inlined_call_operand.hbm [shape: f32[16,768], index: 1, kind: input, shape index: {}]
  %s2 = inlined_call_operand.vmem [shape: f32[1,768], index: 2, kind: input, shape index: {}]
  %s3 = inlined_call_operand.hbm [shape: f32[64,768], index: 3, kind: output, shape index: {}]
  %s4 = sld [smem:[#allocation0]]
  $region26: #{tpu_custom_call.1} parent=0
    _
  %s6 = ssub.s32 1, %s4
  %s7 = scalar_select 0, %s6, %s4
  $region1: #{tpu_custom_call.1} parent=0
    #allocation2 [shape = 'u8[49152]{0}', space=vmem, size = 0xc000, scoped, tag = 'input window, operand 1, single buffered']
    #allocation3 [shape = 's32[1]{0}', space=sflag, size = 0x4, scoped, tag = 'scoped memory for tpu_custom_call.1']
    #allocation4 [shape = 's32[1]{0}', space=sflag, size = 0x4, scoped, tag = 'scoped memory for tpu_custom_call.1']
    #allocation5 [shape = 'u8[196608]{0}', space=vmem, size = 0x30000, scoped, tag = 'output window, operand 0, single buffered']
    %8 = vsyncpa [#allocation3], 0
    %9 = vsyncpa [#allocation4], 0
    // Predicated region
    $region2: #{tpu_custom_call.1} parent=1 // pred_check
      _
    $region3: #{tpu_custom_call.1} parent=1 // pred_check_branch
      %11 = sbr.rel (0) target = $region5
    $region4: #{tpu_custom_call.1} parent=1 // pred_region
      _
    $region5: #{tpu_custom_call.1} parent=1 // pred_fallthru
      _
    // Predicated region
    $region6: #{tpu_custom_call.1} parent=1 // pred_check
      _
    $region7: #{tpu_custom_call.1} parent=1 // pred_check_branch
      %13 = sbr.rel (0) target = $region9
    $region8: #{tpu_custom_call.1} parent=1 // pred_region
      %s15 = ssub.s32 1536, 1536
      %16 = vsyncadd [#allocation3], %s15
      %s17 = sshll.u32 [#allocation2], 4
      %s18 = int_to_ptr.vmem [resolvable:$true] %s17
      %23 = dma.hbm_to_vmem [thread:$0]  %s1, 1536, %s18, [#allocation3], 768, 768, 48
    $region9: #{tpu_custom_call.1} parent=1 // pred_fallthru
      _
    // Predicated region
    $region10: #{tpu_custom_call.1} parent=1 // pred_check
      _
    $region11: #{tpu_custom_call.1} parent=1 // pred_check_branch
      %25 = sbr.rel (0) target = $region13
    $region12: #{tpu_custom_call.1} parent=1 // pred_region
      _
    $region13: #{tpu_custom_call.1} parent=1 // pred_fallthru
      _
    // Predicated region
    $region14: #{tpu_custom_call.1} parent=1 // pred_check
      _
    $region15: #{tpu_custom_call.1} parent=1 // pred_check_branch
      %27 = sbr.rel (0) target = $region17
    $region16: #{tpu_custom_call.1} parent=1 // pred_region
      %28 = dma.done [#allocation3], 1536
    $region17: #{tpu_custom_call.1} parent=1 // pred_fallthru
      _
    %v29 = vld [vmem:[%s0] sm:$0xff]
    %v30 = vld [vmem:[%s0 + $0x8] sm:$0xff]
    %v31 = vld [vmem:[%s0 + $0x10] sm:$0xff]
    %v32 = vld [vmem:[%s0 + $0x18] sm:$0xff]
    %v33 = vld [vmem:[%s0 + $0x20] sm:$0xff]
    %v34 = vld [vmem:[%s0 + $0x28] sm:$0xff]
    %v35 = vld [vmem:[%s0 + $0x30] sm:$0xff]
    %v36 = vld [vmem:[%s0 + $0x38] sm:$0xff]
    %v37 = vld [vmem:[#allocation2] sm:$0xff]
    %v38 = vld [vmem:[#allocation2 + $0x8] sm:$0xff]
    %v39 = vld [vmem:[#allocation2 + $0x10] sm:$0xff]
    %v40 = vld [vmem:[#allocation2 + $0x18] sm:$0xff]
    %v41 = vld [vmem:[#allocation2 + $0x20] sm:$0xff]
    %v42 = vld [vmem:[#allocation2 + $0x28] sm:$0xff]
    %v43 = vld [vmem:[#allocation2 + $0x30] sm:$0xff]
    %v44 = vld [vmem:[#allocation2 + $0x38] sm:$0xff]
    %v45 = vld [vmem:[#allocation2 + $0x40] sm:$0xff]
    %v46 = vld [vmem:[#allocation2 + $0x48] sm:$0xff]
    %v47 = vld [vmem:[#allocation2 + $0x50] sm:$0xff]
    %v48 = vld [vmem:[#allocation2 + $0x58] sm:$0xff]
    %v49 = vld [vmem:[%s2] sm:$0x3f]
    %v51 = vlaneseq
    %v52 = vshrl.u32 %v51, 7
    %v53 = vsub.s32 0, %v52
    %v54 = vrot.slane %v49, %v53
    %v55 = vlaneseq
    %v56 = vshrl.u32 %v55, 7
    %v57 = vsub.s32 1, %v56
    %v58 = vrot.slane %v49, %v57
    %v59 = vlaneseq
    %v60 = vshrl.u32 %v59, 7
    %v61 = vsub.s32 2, %v60
    %v62 = vrot.slane %v49, %v61
    %v63 = vlaneseq
    %v64 = vshrl.u32 %v63, 7
    %v65 = vsub.s32 3, %v64
    %v66 = vrot.slane %v49, %v65
    %v67 = vlaneseq
    %v68 = vshrl.u32 %v67, 7
    %v69 = vsub.s32 4, %v68
    %v70 = vrot.slane %v49, %v69
    %v71 = vlaneseq
    %v72 = vshrl.u32 %v71, 7
    %v73 = vsub.s32 5, %v72
    %v74 = vrot.slane %v49, %v73
    %vm81 = vcmask 130048
    %v83 = vsel %vm81, %v29, 0
    %v86 = vsel %vm81, %v30, 0
    %v89 = vsel %vm81, %v31, 0
    %v92 = vsel %vm81, %v32, 0
    %v95 = vsel %vm81, %v33, 0
    %v98 = vsel %vm81, %v34, 0
    %v101 = vsel %vm81, %v35, 0
    %v104 = vsel %vm81, %v36, 0
    %106 = vmatprep.subr.mxu0 %v38
    %107 = vmatpush1.msra.mxu0 %v37
    %108 = vmatprep.subr.mxu0 %v44
    %109 = vmatpush1.msra.mxu0 %v43
    %110 = vmatprep.subr.mxu0 0.0
    %111 = vmatpush1.msra.mxu0 0.0
    %112 = vmatprep.subr.mxu0 0.0
    %113 = vmatpush1.msra.mxu0 0.0
    %114 = vmatprep.subr.mxu0 0.0
    %115 = vmatpush1.msra.mxu0 0.0
    %116 = vmatprep.subr.mxu0 0.0
    %117 = vmatpush1.msra.mxu0 0.0
    %118 = vmatprep.subr.mxu0 0.0
    %119 = vmatpush1.msra.mxu0 0.0
    %120 = vmatprep.subr.mxu0 0.0
    %121 = vmatpush1.msra.mxu0 0.0
    %122 = vmatprep.subr.mxu0 0.0
    %123 = vmatpush1.msra.mxu0 0.0
    %124 = vmatprep.subr.mxu0 0.0
    %125 = vmatpush1.msra.mxu0 0.0
    %126 = vmatprep.subr.mxu0 0.0
    %127 = vmatpush1.msra.mxu0 0.0
    %128 = vmatprep.subr.mxu0 0.0
    %129 = vmatpush1.msra.mxu0 0.0
    %130 = vmatprep.subr.mxu0 0.0
    %131 = vmatpush1.msra.mxu0 0.0
    %132 = vmatprep.subr.mxu0 0.0
    %133 = vmatpush1.msra.mxu0 0.0
    %134 = vmatprep.subr.mxu0 0.0
    %135 = vmatpush1.msra.mxu0 0.0
    %136 = vmatprep.subr.mxu0 0.0
    %137 = vmatpush1.msra.mxu0 0.0
    %138 = vmatprep.subr.mxu0 0.0
    %139 = vmatpush1.msra.mxu0 0.0
    %140 = vmatprep.subr.mxu0 0.0
    %141 = vmatpush1.msra.mxu0 0.0
    %142 = vmatprep.subr.mxu0 0.0
    %143 = vmatpush1.msra.mxu0 0.0
    %144 = vmatprep.subr.mxu0 0.0
    %145 = vmatpush1.msra.mxu0 0.0
    %146 = vmatprep.subr.mxu0 0.0
    %147 = vmatpush1.msra.mxu0 0.0
    %148 = vmatprep.subr.mxu0 0.0
    %149 = vmatpush1.msra.mxu0 0.0
    %150 = vmatprep.subr.mxu0 0.0
    %151 = vmatpush1.msra.mxu0 0.0
    %152 = vmatprep.subr.mxu0 0.0
    %153 = vmatpush1.msra.mxu0 0.0
    %154 = vmatprep.subr.mxu0 0.0
    %155 = vmatpush1.msra.mxu0 0.0
    %156 = vmatprep.subr.mxu0 0.0
    %157 = vmatpush1.msra.mxu0 0.0
    %158 = vmatprep.subr.mxu0 0.0
    %159 = vmatpush1.msra.mxu0 0.0
    %160 = vmatprep.subr.mxu0 0.0
    %161 = vmatpush1.msra.mxu0 0.0
    %162 = vmatprep.subr.mxu0 0.0
    %163 = vmatpush1.msra.mxu0 0.0
    %164 = vmatprep.subr.mxu0 0.0
    %165 = vmatpush1.msra.mxu0 0.0
    %166 = vmatprep.subr.mxu0 0.0
    %167 = vmatpush1.msra.mxu0 0.0
    %168 = vmatprep.subr.mxu0 0.0
    %169 = vmatpush1.msra.mxu0 0.0
    %170 = vmatprep.mubr.f32.mxu0 0.0
    %171 = vmatmul.mubr.f32.gmra.mrb[0].mxu0 %v83
    %v172 = vpop.f32.mrb[0].mxu0
    %v173 = vadd.f32 %v54, %v172
    %v174 = vpop.f32.mrb[0].mxu0
    %v175 = vadd.f32 %v58, %v174
    %176 = vmatprep.mubr.f32.mxu0 0.0
    %177 = vmatmul.mubr.f32.gmra.mrb[0].mxu0 %v86
    %v178 = vpop.f32.mrb[0].mxu0
    %v179 = vadd.f32 %v54, %v178
    %v180 = vpop.f32.mrb[0].mxu0
    %v181 = vadd.f32 %v58, %v180
    %182 = vmatprep.mubr.f32.mxu0 0.0
    %183 = vmatmul.mubr.f32.gmra.mrb[0].mxu0 %v89
    %v184 = vpop.f32.mrb[0].mxu0
    %v185 = vadd.f32 %v54, %v184
    %v186 = vpop.f32.mrb[0].mxu0
    %v187 = vadd.f32 %v58, %v186
    %188 = vmatprep.mubr.f32.mxu0 0.0
    %189 = vmatmul.mubr.f32.gmra.mrb[0].mxu0 %v92
    %v190 = vpop.f32.mrb[0].mxu0
    %v191 = vadd.f32 %v54, %v190
    %v192 = vpop.f32.mrb[0].mxu0
    %v193 = vadd.f32 %v58, %v192
    %194 = vmatprep.mubr.f32.mxu0 0.0
    %195 = vmatmul.mubr.f32.gmra.mrb[0].mxu0 %v95
    %v196 = vpop.f32.mrb[0].mxu0
    %v197 = vadd.f32 %v54, %v196
    %v198 = vpop.f32.mrb[0].mxu0
    %v199 = vadd.f32 %v58, %v198
    %200 = vmatprep.mubr.f32.mxu0 0.0
    %201 = vmatmul.mubr.f32.gmra.mrb[0].mxu0 %v98
    %v202 = vpop.f32.mrb[0].mxu0
    %v203 = vadd.f32 %v54, %v202
    %v204 = vpop.f32.mrb[0].mxu0
    %v205 = vadd.f32 %v58, %v204
    %206 = vmatprep.mubr.f32.mxu0 0.0
    %207 = vmatmul.mubr.f32.gmra.mrb[0].mxu0 %v101
    %v208 = vpop.f32.mrb[0].mxu0
    %v209 = vadd.f32 %v54, %v208
    %v210 = vpop.f32.mrb[0].mxu0
    %v211 = vadd.f32 %v58, %v210
    %212 = vmatprep.mubr.f32.mxu0 0.0
    %213 = vmatmul.mubr.f32.gmra.mrb[0].mxu0 %v104
    %v214 = vpop.f32.mrb[0].mxu0
    %v215 = vadd.f32 %v54, %v214
    %v216 = vpop.f32.mrb[0].mxu0
    %v217 = vadd.f32 %v58, %v216
    %218 = vdwg.mxu0
    %219 = vmatprep.subr.mxu0 %v40
    %220 = vmatpush1.msra.mxu0 %v39
    %221 = vmatprep.subr.mxu0 %v46
    %222 = vmatpush1.msra.mxu0 %v45
    %223 = vmatprep.subr.mxu0 0.0
    %224 = vmatpush1.msra.mxu0 0.0
    %225 = vmatprep.subr.mxu0 0.0
    %226 = vmatpush1.msra.mxu0 0.0
    %227 = vmatprep.subr.mxu0 0.0
    %228 = vmatpush1.msra.mxu0 0.0
    %229 = vmatprep.subr.mxu0 0.0
    %230 = vmatpush1.msra.mxu0 0.0
    %231 = vmatprep.subr.mxu0 0.0
    %232 = vmatpush1.msra.mxu0 0.0
    %233 = vmatprep.subr.mxu0 0.0
    %234 = vmatpush1.msra.mxu0 0.0
    %235 = vmatprep.subr.mxu0 0.0
    %236 = vmatpush1.msra.mxu0 0.0
    %237 = vmatprep.subr.mxu0 0.0
    %238 = vmatpush1.msra.mxu0 0.0
    %239 = vmatprep.subr.mxu0 0.0
    %240 = vmatpush1.msra.mxu0 0.0
    %241 = vmatprep.subr.mxu0 0.0
    %242 = vmatpush1.msra.mxu0 0.0
    %243 = vmatprep.subr.mxu0 0.0
    %244 = vmatpush1.msra.mxu0 0.0
    %245 = vmatprep.subr.mxu0 0.0
    %246 = vmatpush1.msra.mxu0 0.0
    %247 = vmatprep.subr.mxu0 0.0
    %248 = vmatpush1.msra.mxu0 0.0
    %249 = vmatprep.subr.mxu0 0.0
    %250 = vmatpush1.msra.mxu0 0.0
    %251 = vmatprep.subr.mxu0 0.0
    %252 = vmatpush1.msra.mxu0 0.0
    %253 = vmatprep.subr.mxu0 0.0
    %254 = vmatpush1.msra.mxu0 0.0
    %255 = vmatprep.subr.mxu0 0.0
    %256 = vmatpush1.msra.mxu0 0.0
    %257 = vmatprep.subr.mxu0 0.0
    %258 = vmatpush1.msra.mxu0 0.0
    %259 = vmatprep.subr.mxu0 0.0
    %260 = vmatpush1.msra.mxu0 0.0
    %261 = vmatprep.subr.mxu0 0.0
    %262 = vmatpush1.msra.mxu0 0.0
    %263 = vmatprep.subr.mxu0 0.0
    %264 = vmatpush1.msra.mxu0 0.0
    %265 = vmatprep.subr.mxu0 0.0
    %266 = vmatpush1.msra.mxu0 0.0
    %267 = vmatprep.subr.mxu0 0.0
    %268 = vmatpush1.msra.mxu0 0.0
    %269 = vmatprep.subr.mxu0 0.0
    %270 = vmatpush1.msra.mxu0 0.0
    %271 = vmatprep.subr.mxu0 0.0
    %272 = vmatpush1.msra.mxu0 0.0
    %273 = vmatprep.subr.mxu0 0.0
    %274 = vmatpush1.msra.mxu0 0.0
    %275 = vmatprep.subr.mxu0 0.0
    %276 = vmatpush1.msra.mxu0 0.0
    %277 = vmatprep.subr.mxu0 0.0
    %278 = vmatpush1.msra.mxu0 0.0
    %279 = vmatprep.subr.mxu0 0.0
    %280 = vmatpush1.msra.mxu0 0.0
    %281 = vmatprep.subr.mxu0 0.0
    %282 = vmatpush1.msra.mxu0 0.0
    %283 = vmatprep.mubr.f32.mxu0 0.0
    %284 = vmatmul.mubr.f32.gmra.mrb[0].mxu0 %v83
    %v285 = vpop.f32.mrb[0].mxu0
    %v286 = vadd.f32 %v62, %v285
    %v287 = vpop.f32.mrb[0].mxu0
    %v288 = vadd.f32 %v66, %v287
    %289 = vmatprep.mubr.f32.mxu0 0.0
    %290 = vmatmul.mubr.f32.gmra.mrb[0].mxu0 %v86
    %v291 = vpop.f32.mrb[0].mxu0
    %v292 = vadd.f32 %v62, %v291
    %v293 = vpop.f32.mrb[0].mxu0
    %v294 = vadd.f32 %v66, %v293
    %295 = vmatprep.mubr.f32.mxu0 0.0
    %296 = vmatmul.mubr.f32.gmra.mrb[0].mxu0 %v89
    %v297 = vpop.f32.mrb[0].mxu0
    %v298 = vadd.f32 %v62, %v297
    %v299 = vpop.f32.mrb[0].mxu0
    %v300 = vadd.f32 %v66, %v299
    %301 = vmatprep.mubr.f32.mxu0 0.0
    %302 = vmatmul.mubr.f32.gmra.mrb[0].mxu0 %v92
    %v303 = vpop.f32.mrb[0].mxu0
    %v304 = vadd.f32 %v62, %v303
    %v305 = vpop.f32.mrb[0].mxu0
    %v306 = vadd.f32 %v66, %v305
    %307 = vmatprep.mubr.f32.mxu0 0.0
    %308 = vmatmul.mubr.f32.gmra.mrb[0].mxu0 %v95
    %v309 = vpop.f32.mrb[0].mxu0
    %v310 = vadd.f32 %v62, %v309
    %v311 = vpop.f32.mrb[0].mxu0
    %v312 = vadd.f32 %v66, %v311
    %313 = vmatprep.mubr.f32.mxu0 0.0
    %314 = vmatmul.mubr.f32.gmra.mrb[0].mxu0 %v98
    %v315 = vpop.f32.mrb[0].mxu0
    %v316 = vadd.f32 %v62, %v315
    %v317 = vpop.f32.mrb[0].mxu0
    %v318 = vadd.f32 %v66, %v317
    %319 = vmatprep.mubr.f32.mxu0 0.0
    %320 = vmatmul.mubr.f32.gmra.mrb[0].mxu0 %v101
    %v321 = vpop.f32.mrb[0].mxu0
    %v322 = vadd.f32 %v62, %v321
    %v323 = vpop.f32.mrb[0].mxu0
    %v324 = vadd.f32 %v66, %v323
    %325 = vmatprep.mubr.f32.mxu0 0.0
    %326 = vmatmul.mubr.f32.gmra.mrb[0].mxu0 %v104
    %v327 = vpop.f32.mrb[0].mxu0
    %v328 = vadd.f32 %v62, %v327
    %v329 = vpop.f32.mrb[0].mxu0
    %v330 = vadd.f32 %v66, %v329
    %331 = vdwg.mxu0
    %332 = vmatprep.subr.mxu0 %v42
    %333 = vmatpush1.msra.mxu0 %v41
    %334 = vmatprep.subr.mxu0 %v48
    %335 = vmatpush1.msra.mxu0 %v47
    %336 = vmatprep.subr.mxu0 0.0
    %337 = vmatpush1.msra.mxu0 0.0
    %338 = vmatprep.subr.mxu0 0.0
    %339 = vmatpush1.msra.mxu0 0.0
    %340 = vmatprep.subr.mxu0 0.0
    %341 = vmatpush1.msra.mxu0 0.0
    %342 = vmatprep.subr.mxu0 0.0
    %343 = vmatpush1.msra.mxu0 0.0
    %344 = vmatprep.subr.mxu0 0.0
    %345 = vmatpush1.msra.mxu0 0.0
    %346 = vmatprep.subr.mxu0 0.0
    %347 = vmatpush1.msra.mxu0 0.0
    %348 = vmatprep.subr.mxu0 0.0
    %349 = vmatpush1.msra.mxu0 0.0
    %350 = vmatprep.subr.mxu0 0.0
    %351 = vmatpush1.msra.mxu0 0.0
    %352 = vmatprep.subr.mxu0 0.0
    %353 = vmatpush1.msra.mxu0 0.0
    %354 = vmatprep.subr.mxu0 0.0
    %355 = vmatpush1.msra.mxu0 0.0
    %356 = vmatprep.subr.mxu0 0.0
    %357 = vmatpush1.msra.mxu0 0.0
    %358 = vmatprep.subr.mxu0 0.0
    %359 = vmatpush1.msra.mxu0 0.0
    %360 = vmatprep.subr.mxu0 0.0
    %361 = vmatpush1.msra.mxu0 0.0
    %362 = vmatprep.subr.mxu0 0.0
    %363 = vmatpush1.msra.mxu0 0.0
    %364 = vmatprep.subr.mxu0 0.0
    %365 = vmatpush1.msra.mxu0 0.0
    %366 = vmatprep.subr.mxu0 0.0
    %367 = vmatpush1.msra.mxu0 0.0
    %368 = vmatprep.subr.mxu0 0.0
    %369 = vmatpush1.msra.mxu0 0.0
    %370 = vmatprep.subr.mxu0 0.0
    %371 = vmatpush1.msra.mxu0 0.0
    %372 = vmatprep.subr.mxu0 0.0
    %373 = vmatpush1.msra.mxu0 0.0
    %374 = vmatprep.subr.mxu0 0.0
    %375 = vmatpush1.msra.mxu0 0.0
    %376 = vmatprep.subr.mxu0 0.0
    %377 = vmatpush1.msra.mxu0 0.0
    %378 = vmatprep.subr.mxu0 0.0
    %379 = vmatpush1.msra.mxu0 0.0
    %380 = vmatprep.subr.mxu0 0.0
    %381 = vmatpush1.msra.mxu0 0.0
    %382 = vmatprep.subr.mxu0 0.0
    %383 = vmatpush1.msra.mxu0 0.0
    %384 = vmatprep.subr.mxu0 0.0
    %385 = vmatpush1.msra.mxu0 0.0
    %386 = vmatprep.subr.mxu0 0.0
    %387 = vmatpush1.msra.mxu0 0.0
    %388 = vmatprep.subr.mxu0 0.0
    %389 = vmatpush1.msra.mxu0 0.0
    %390 = vmatprep.subr.mxu0 0.0
    %391 = vmatpush1.msra.mxu0 0.0
    %392 = vmatprep.subr.mxu0 0.0
    %393 = vmatpush1.msra.mxu0 0.0
    %394 = vmatprep.subr.mxu0 0.0
    %395 = vmatpush1.msra.mxu0 0.0
    %396 = vmatprep.mubr.f32.mxu0 0.0
    %397 = vmatmul.mubr.f32.gmra.mrb[0].mxu0 %v83
    %v398 = vpop.f32.mrb[0].mxu0
    %v399 = vadd.f32 %v70, %v398
    %v400 = vpop.f32.mrb[0].mxu0
    %v401 = vadd.f32 %v74, %v400
    %402 = vmatprep.mubr.f32.mxu0 0.0
    %403 = vmatmul.mubr.f32.gmra.mrb[0].mxu0 %v86
    %v404 = vpop.f32.mrb[0].mxu0
    %v405 = vadd.f32 %v70, %v404
    %v406 = vpop.f32.mrb[0].mxu0
    %v407 = vadd.f32 %v74, %v406
    %408 = vmatprep.mubr.f32.mxu0 0.0
    %409 = vmatmul.mubr.f32.gmra.mrb[0].mxu0 %v89
    %v410 = vpop.f32.mrb[0].mxu0
    %v411 = vadd.f32 %v70, %v410
    %v412 = vpop.f32.mrb[0].mxu0
    %v413 = vadd.f32 %v74, %v412
    %414 = vmatprep.mubr.f32.mxu0 0.0
    %415 = vmatmul.mubr.f32.gmra.mrb[0].mxu0 %v92
    %v416 = vpop.f32.mrb[0].mxu0
    %v417 = vadd.f32 %v70, %v416
    %v418 = vpop.f32.mrb[0].mxu0
    %v419 = vadd.f32 %v74, %v418
    %420 = vmatprep.mubr.f32.mxu0 0.0
    %421 = vmatmul.mubr.f32.gmra.mrb[0].mxu0 %v95
    %v422 = vpop.f32.mrb[0].mxu0
    %v423 = vadd.f32 %v70, %v422
    %v424 = vpop.f32.mrb[0].mxu0
    %v425 = vadd.f32 %v74, %v424
    %426 = vmatprep.mubr.f32.mxu0 0.0
    %427 = vmatmul.mubr.f32.gmra.mrb[0].mxu0 %v98
    %v428 = vpop.f32.mrb[0].mxu0
    %v429 = vadd.f32 %v70, %v428
    %v430 = vpop.f32.mrb[0].mxu0
    %v431 = vadd.f32 %v74, %v430
    %432 = vmatprep.mubr.f32.mxu0 0.0
    %433 = vmatmul.mubr.f32.gmra.mrb[0].mxu0 %v101
    %v434 = vpop.f32.mrb[0].mxu0
    %v435 = vadd.f32 %v70, %v434
    %v436 = vpop.f32.mrb[0].mxu0
    %v437 = vadd.f32 %v74, %v436
    %438 = vmatprep.mubr.f32.mxu0 0.0
    %439 = vmatmul.mubr.f32.gmra.mrb[0].mxu0 %v104
    %v440 = vpop.f32.mrb[0].mxu0
    %v441 = vadd.f32 %v70, %v440
    %v442 = vpop.f32.mrb[0].mxu0
    %v443 = vadd.f32 %v74, %v442
    %444 = vdwg.mxu0
    %445 = vst [vmem:[#allocation5] sm:$0xff] %v173
    %446 = vst [vmem:[#allocation5 + $0x8] sm:$0xff] %v175
    %447 = vst [vmem:[#allocation5 + $0x10] sm:$0xff] %v286
    %448 = vst [vmem:[#allocation5 + $0x18] sm:$0xff] %v288
    %449 = vst [vmem:[#allocation5 + $0x20] sm:$0xff] %v399
    %450 = vst [vmem:[#allocation5 + $0x28] sm:$0xff] %v401
    %451 = vst [vmem:[#allocation5 + $0x30] sm:$0xff] %v179
    %452 = vst [vmem:[#allocation5 + $0x38] sm:$0xff] %v181
    %453 = vst [vmem:[#allocation5 + $0x40] sm:$0xff] %v292
    %454 = vst [vmem:[#allocation5 + $0x48] sm:$0xff] %v294
    %455 = vst [vmem:[#allocation5 + $0x50] sm:$0xff] %v405
    %456 = vst [vmem:[#allocation5 + $0x58] sm:$0xff] %v407
    %457 = vst [vmem:[#allocation5 + $0x60] sm:$0xff] %v185
    %458 = vst [vmem:[#allocation5 + $0x68] sm:$0xff] %v187
    %459 = vst [vmem:[#allocation5 + $0x70] sm:$0xff] %v298
    %460 = vst [vmem:[#allocation5 + $0x78] sm:$0xff] %v300
    %461 = vst [vmem:[#allocation5 + $0x80] sm:$0xff] %v411
    %462 = vst [vmem:[#allocation5 + $0x88] sm:$0xff] %v413
    %463 = vst [vmem:[#allocation5 + $0x90] sm:$0xff] %v191
    %464 = vst [vmem:[#allocation5 + $0x98] sm:$0xff] %v193
    %465 = vst [vmem:[#allocation5 + $0xa0] sm:$0xff] %v304
    %466 = vst [vmem:[#allocation5 + $0xa8] sm:$0xff] %v306
    %467 = vst [vmem:[#allocation5 + $0xb0] sm:$0xff] %v417
    %468 = vst [vmem:[#allocation5 + $0xb8] sm:$0xff] %v419
    %469 = vst [vmem:[#allocation5 + $0xc0] sm:$0xff] %v197
    %470 = vst [vmem:[#allocation5 + $0xc8] sm:$0xff] %v199
    %471 = vst [vmem:[#allocation5 + $0xd0] sm:$0xff] %v310
    %472 = vst [vmem:[#allocation5 + $0xd8] sm:$0xff] %v312
    %473 = vst [vmem:[#allocation5 + $0xe0] sm:$0xff] %v423
    %474 = vst [vmem:[#allocation5 + $0xe8] sm:$0xff] %v425
    %475 = vst [vmem:[#allocation5 + $0xf0] sm:$0xff] %v203
    %476 = vst [vmem:[#allocation5 + $0xf8] sm:$0xff] %v205
    %477 = vst [vmem:[#allocation5 + $0x100] sm:$0xff] %v316
    %478 = vst [vmem:[#allocation5 + $0x108] sm:$0xff] %v318
    %479 = vst [vmem:[#allocation5 + $0x110] sm:$0xff] %v429
    %480 = vst [vmem:[#allocation5 + $0x118] sm:$0xff] %v431
    %481 = vst [vmem:[#allocation5 + $0x120] sm:$0xff] %v209
    %482 = vst [vmem:[#allocation5 + $0x128] sm:$0xff] %v211
    %483 = vst [vmem:[#allocation5 + $0x130] sm:$0xff] %v322
    %484 = vst [vmem:[#allocation5 + $0x138] sm:$0xff] %v324
    %485 = vst [vmem:[#allocation5 + $0x140] sm:$0xff] %v435
    %486 = vst [vmem:[#allocation5 + $0x148] sm:$0xff] %v437
    %487 = vst [vmem:[#allocation5 + $0x150] sm:$0xff] %v215
    %488 = vst [vmem:[#allocation5 + $0x158] sm:$0xff] %v217
    %489 = vst [vmem:[#allocation5 + $0x160] sm:$0xff] %v328
    %490 = vst [vmem:[#allocation5 + $0x168] sm:$0xff] %v330
    %491 = vst [vmem:[#allocation5 + $0x170] sm:$0xff] %v441
    %492 = vst [vmem:[#allocation5 + $0x178] sm:$0xff] %v443
    // Predicated region
    $region18: #{tpu_custom_call.1} parent=1 // pred_check
      _
    $region19: #{tpu_custom_call.1} parent=1 // pred_check_branch
      %494 = sbr.rel (0) target = $region21
    $region20: #{tpu_custom_call.1} parent=1 // pred_region
      %s496 = ssub.s32 6144, 6144
      %497 = vsyncadd [#allocation4], %s496
      %s498 = sshll.u32 [#allocation5], 4
      %s499 = int_to_ptr.vmem [resolvable:$true] %s498
      %504 = dma.vmem_to_hbm [thread:$0]  %s499, 6144, %s3, [#allocation4], 768, 768, 48
    $region21: #{tpu_custom_call.1} parent=1 // pred_fallthru
      _
    // Predicated region
    $region22: #{tpu_custom_call.1} parent=1 // pred_check
      _
    $region23: #{tpu_custom_call.1} parent=1 // pred_check_branch
      %506 = sbr.rel (0) target = $region25
    $region24: #{tpu_custom_call.1} parent=1 // pred_region
      %507 = dma.done [#allocation4], 6144
    $region25: #{tpu_custom_call.1} parent=1 // pred_fallthru
      _
    %508 = vsyncpa [#allocation3], 1
    %509 = vsyncpa [#allocation4], 1

</llo_original>
